<compile_context>
chip_gen: v6e
topology: v6e:2x2x1
jax: 0.10.0
libtpu: 0.0.40
codegen_flags: <defaults>
</compile_context>

<pallas_src>
import functools
import math

import jax
import jax.numpy as jnp
from jax.experimental import pallas as pl
from jax.experimental.pallas import tpu as pltpu


def _style_mod_kernel(lat_ref, wa_ref, wb_ref, ba_ref, bb_ref, x_ref, o_ref,
                      *, w_scale, b_mul):
    """One grid step: modulate a (1, C, Sb) slab of x belonging to batch n.

    lat_ref : (N, L)   full latent matrix (resident, constant index_map)
    wa_ref  : (L, C)   W[:C]^T  (alpha half, transposed, resident)
    wb_ref  : (L, C)   W[C:]^T  (beta half, transposed, resident)
    ba_ref  : (1, C)   bias[:C]
    bb_ref  : (1, C)   bias[C:]
    x_ref   : (1, C, Sb)
    o_ref   : (1, C, Sb)
    """
    n = pl.program_id(0)
    lat = lat_ref[pl.ds(n, 1), :]                                     # (1, L)
    # EqualizedLinear: latent @ (W * w_scale)^T + bias * b_mul
    # (scale folded after the dot -- mathematically identical, fewer VPU ops)
    alpha = (jnp.dot(lat, wa_ref[...], preferred_element_type=jnp.float32)
             * w_scale + ba_ref[...] * b_mul + 1.0)                   # (1, C)
    beta = (jnp.dot(lat, wb_ref[...], preferred_element_type=jnp.float32)
            * w_scale + bb_ref[...] * b_mul)                          # (1, C)
    x = x_ref[...].astype(jnp.float32)                                # (1, C, Sb)
    o_ref[...] = (x * alpha[:, :, None] + beta[:, :, None]).astype(o_ref.dtype)


def _pick_spatial_tile(hw, c, itemsize, target_bytes=2 * 1024 * 1024):
    """Largest divisor of hw that is a multiple of 128 and keeps the
    (1, C, Sb) block near target_bytes; falls back to the full extent."""
    cap = max(128, target_bytes // max(c * itemsize, 1))
    if hw <= cap or hw % 128 != 0:
        return hw
    cap = (cap // 128) * 128
    for cand in range(cap, 0, -128):
        if hw % cand == 0:
            return cand
    return hw


def style_mod(x, latent, weight, bias, *, weight_scale=1.0, b_mul=1.0):
    """Pallas StyleMod.forward for NC... input x (e.g. NCHW) and latent (N, L)."""
    N, C = x.shape[0], x.shape[1]
    spatial_shape = x.shape[2:]
    HW = int(math.prod(spatial_shape)) if spatial_shape else 1
    L = latent.shape[-1]
    assert latent.shape == (N, L)
    assert weight.shape == (2 * C, L)
    assert bias.shape == (2 * C,)

    itemsize = jnp.dtype(x.dtype).itemsize
    x_r = x.reshape(N, C, HW)          # free view: lane axis = flattened spatial

    # Split/transpose the tiny (2C, L) parameter so the kernel dot needs no
    # in-kernel transpose; these stay resident in VMEM.
    w_alpha_t = jnp.transpose(weight[:C]).astype(x.dtype)             # (L, C)
    w_beta_t = jnp.transpose(weight[C:]).astype(x.dtype)              # (L, C)
    b_alpha = bias[:C].reshape(1, C).astype(x.dtype)
    b_beta = bias[C:].reshape(1, C).astype(x.dtype)
    lat = latent.astype(x.dtype)

    Sb = _pick_spatial_tile(HW, C, itemsize)
    grid = (N, HW // Sb)

    const2 = lambda n, s: (0, 0)
    in_specs = [
        pl.BlockSpec((N, L), const2),                                 # latent
        pl.BlockSpec((L, C), const2),                                 # W_alpha^T
        pl.BlockSpec((L, C), const2),                                 # W_beta^T
        pl.BlockSpec((1, C), const2),                                 # b_alpha
        pl.BlockSpec((1, C), const2),                                 # b_beta
        pl.BlockSpec((1, C, Sb), lambda n, s: (n, 0, s)),             # x slab
    ]
    out_specs = pl.BlockSpec((1, C, Sb), lambda n, s: (n, 0, s))

    block_bytes = C * Sb * itemsize
    param_bytes = (N * L + 2 * L * C + 2 * C) * itemsize
    vmem_limit = int(min(max(6 * block_bytes + 4 * param_bytes, 16 << 20), 48 << 20))

    flops = 2 * N * C * HW + 2 * N * L * (2 * C)
    bytes_accessed = 2 * N * C * HW * itemsize + param_bytes

    kernel = functools.partial(_style_mod_kernel,
                               w_scale=float(weight_scale), b_mul=float(b_mul))
    out = pl.pallas_call(
        kernel,
        out_shape=jax.ShapeDtypeStruct((N, C, HW), x.dtype),
        grid=grid,
        in_specs=in_specs,
        out_specs=out_specs,
        compiler_params=pltpu.CompilerParams(
            dimension_semantics=("parallel", "parallel"),
            vmem_limit_bytes=vmem_limit,
        ),
        cost_estimate=pl.CostEstimate(
            flops=flops, transcendentals=0, bytes_accessed=bytes_accessed),
    )(lat, w_alpha_t, w_beta_t, b_alpha, b_beta, x_r)
    return out.reshape(x.shape)


def _reference(x, latent, weight, bias, weight_scale=1.0, b_mul=1.0):
    style = latent @ (weight * weight_scale).T + bias * b_mul          # (N, 2C)
    N, C = x.shape[0], x.shape[1]
    style = style.reshape((N, 2, C) + (1,) * (x.ndim - 2))
    alpha = style[:, 0] + 1.0
    beta = style[:, 1]
    return (x * alpha + beta).astype(x.dtype)


if __name__ == "__main__":
    key = jax.random.PRNGKey(0)
    k1, k2, k3, k4 = jax.random.split(key, 4)

    N, C, H, W = 2, 4, 16, 16
    L = 32                      # latent_size
    use_wscale = True
    lrmul = 1.0

    # EqualizedLinear(latent_size, 2*C, numMul=1.0, increaseWeightScale=use_wscale)
    val_scale = 1.0 * L ** (-0.5)
    if use_wscale:
        w_init_mul, weight_scale = 1.0 / lrmul, val_scale * lrmul
    else:
        w_init_mul, weight_scale = val_scale / lrmul, lrmul
    b_mul = lrmul

    x = jax.random.normal(k1, (N, C, H, W), dtype=jnp.float32)
    latent = jax.random.normal(k2, (N, L), dtype=jnp.float32)
    weight = jax.random.normal(k3, (2 * C, L), dtype=jnp.float32) * w_init_mul
    # Module inits bias to zeros; use a nonzero bias so the beta path is exercised.
    bias = jax.random.normal(k4, (2 * C,), dtype=jnp.float32) * 0.1

    out = style_mod(x, latent, weight, bias,
                    weight_scale=weight_scale, b_mul=b_mul)
    out = jax.block_until_ready(out)

    ref = _reference(x, latent, weight, bias, weight_scale, b_mul)
    assert out.shape == x.shape, out.shape
    assert jnp.allclose(out, ref, atol=1e-5, rtol=1e-5), \
        float(jnp.max(jnp.abs(out - ref)))

    print("KERNEL_OK")
</pallas_src>

<mosaic_0001>
module attributes {stable_mosaic.version = 11 : i64} {
  func.func @_style_mod_kernel(%arg0: i32, %arg1: i32, %arg2: memref<2x32xf32, #tpu.memory_space<vmem>>, %arg3: memref<32x4xf32, #tpu.memory_space<vmem>>, %arg4: memref<32x4xf32, #tpu.memory_space<vmem>>, %arg5: memref<1x4xf32, #tpu.memory_space<vmem>>, %arg6: memref<1x4xf32, #tpu.memory_space<vmem>>, %arg7: memref<1x4x256xf32, #tpu.memory_space<vmem>>, %arg8: memref<1x4x256xf32, #tpu.memory_space<vmem>>) attributes {dimension_semantics = [#tpu.dimension_semantics<parallel>, #tpu.dimension_semantics<parallel>], iteration_bounds = array<i64: 2, 1>, scalar_prefetch = 0 : i64, scratch_operands = 0 : i64, tpu.core_type = #tpu.core_type<tc>, window_params = [{pipeline_mode = #tpu.pipeline_mode<synchronous>, transform_indices = @transform_0, window_bounds = array<i64: 2, 32>}, {pipeline_mode = #tpu.pipeline_mode<synchronous>, transform_indices = @transform_1, window_bounds = array<i64: 32, 4>}, {pipeline_mode = #tpu.pipeline_mode<synchronous>, transform_indices = @transform_2, window_bounds = array<i64: 32, 4>}, {pipeline_mode = #tpu.pipeline_mode<synchronous>, transform_indices = @transform_3, window_bounds = array<i64: 1, 4>}, {pipeline_mode = #tpu.pipeline_mode<synchronous>, transform_indices = @transform_4, window_bounds = array<i64: 1, 4>}, {transform_indices = @transform_5, window_bounds = array<i64: 1, 4, 256>}, {transform_indices = @transform_6, window_bounds = array<i64: 1, 4, 256>}]} {
    %0 = arith.index_cast %arg0 : i32 to index
    %c0 = arith.constant 0 : index
    %1 = vector.load %arg2[%0, %c0] : memref<2x32xf32, #tpu.memory_space<vmem>>, vector<1x32xf32>
    %c0_0 = arith.constant 0 : index
    %c0_1 = arith.constant 0 : index
    %2 = vector.load %arg3[%c0_0, %c0_1] : memref<32x4xf32, #tpu.memory_space<vmem>>, vector<32x4xf32>
    %cst = arith.constant dense<0.000000e+00> : vector<1x4xf32>
    %3 = tpu.matmul %1, %2, %cst {dimension_numbers = #tpu.dot_dimension_numbers<[1], [0], [0], [1], [0, 0, 1, 1], [], []>} : vector<1x32xf32>, vector<32x4xf32>, vector<1x4xf32> -> vector<1x4xf32>
    %cst_2 = arith.constant 0.176776692 : f32
    %4 = vector.broadcast %cst_2 : f32 to vector<1x4xf32>
    %5 = arith.mulf %3, %4 : vector<1x4xf32>
    %c0_3 = arith.constant 0 : index
    %c0_4 = arith.constant 0 : index
    %6 = vector.load %arg5[%c0_3, %c0_4] : memref<1x4xf32, #tpu.memory_space<vmem>>, vector<1x4xf32>
    %cst_5 = arith.constant 1.000000e+00 : f32
    %7 = vector.broadcast %cst_5 : f32 to vector<1x4xf32>
    %8 = arith.mulf %6, %7 : vector<1x4xf32>
    %9 = arith.addf %5, %8 : vector<1x4xf32>
    %cst_6 = arith.constant 1.000000e+00 : f32
    %10 = vector.broadcast %cst_6 : f32 to vector<1x4xf32>
    %11 = arith.addf %9, %10 : vector<1x4xf32>
    %c0_7 = arith.constant 0 : index
    %c0_8 = arith.constant 0 : index
    %12 = vector.load %arg4[%c0_7, %c0_8] : memref<32x4xf32, #tpu.memory_space<vmem>>, vector<32x4xf32>
    %cst_9 = arith.constant dense<0.000000e+00> : vector<1x4xf32>
    %13 = tpu.matmul %1, %12, %cst_9 {dimension_numbers = #tpu.dot_dimension_numbers<[1], [0], [0], [1], [0, 0, 1, 1], [], []>} : vector<1x32xf32>, vector<32x4xf32>, vector<1x4xf32> -> vector<1x4xf32>
    %cst_10 = arith.constant 0.176776692 : f32
    %14 = vector.broadcast %cst_10 : f32 to vector<1x4xf32>
    %15 = arith.mulf %13, %14 : vector<1x4xf32>
    %c0_11 = arith.constant 0 : index
    %c0_12 = arith.constant 0 : index
    %16 = vector.load %arg6[%c0_11, %c0_12] : memref<1x4xf32, #tpu.memory_space<vmem>>, vector<1x4xf32>
    %cst_13 = arith.constant 1.000000e+00 : f32
    %17 = vector.broadcast %cst_13 : f32 to vector<1x4xf32>
    %18 = arith.mulf %16, %17 : vector<1x4xf32>
    %19 = arith.addf %15, %18 : vector<1x4xf32>
    %c0_14 = arith.constant 0 : index
    %c0_15 = arith.constant 0 : index
    %c0_16 = arith.constant 0 : index
    %20 = vector.load %arg7[%c0_14, %c0_15, %c0_16] : memref<1x4x256xf32, #tpu.memory_space<vmem>>, vector<1x4x256xf32>
    %21 = vector.shape_cast %11 : vector<1x4xf32> to vector<1x4x1xf32>
    %22 = vector.broadcast %21 : vector<1x4x1xf32> to vector<1x4x256xf32>
    %23 = arith.mulf %20, %22 : vector<1x4x256xf32>
    %24 = vector.shape_cast %19 : vector<1x4xf32> to vector<1x4x1xf32>
    %25 = vector.broadcast %24 : vector<1x4x1xf32> to vector<1x4x256xf32>
    %26 = arith.addf %23, %25 : vector<1x4x256xf32>
    %c0_17 = arith.constant 0 : index
    %c0_18 = arith.constant 0 : index
    %c0_19 = arith.constant 0 : index
    %27 = vector.load %arg8[%c0_17, %c0_18, %c0_19] : memref<1x4x256xf32, #tpu.memory_space<vmem>>, vector<1x4x256xf32>
    tpu.vector_store %arg8[%c0_17, %c0_18, %c0_19], %26 {strides = array<i32>} : memref<1x4x256xf32, #tpu.memory_space<vmem>>, vector<1x4x256xf32>,
    return
  }
  func.func @transform_0(%arg0: i32, %arg1: i32) -> (i32, i32) {
    %c0_i32 = arith.constant 0 : i32
    %c0_i32_0 = arith.constant 0 : i32
    %c0_i32_1 = arith.constant 0 : i32
    return %c0_i32, %c0_i32_0 : i32, i32
  }
  func.func @transform_1(%arg0: i32, %arg1: i32) -> (i32, i32) {
    %c0_i32 = arith.constant 0 : i32
    %c0_i32_0 = arith.constant 0 : i32
    %c0_i32_1 = arith.constant 0 : i32
    return %c0_i32, %c0_i32_0 : i32, i32
  }
  func.func @transform_2(%arg0: i32, %arg1: i32) -> (i32, i32) {
    %c0_i32 = arith.constant 0 : i32
    %c0_i32_0 = arith.constant 0 : i32
    %c0_i32_1 = arith.constant 0 : i32
    return %c0_i32, %c0_i32_0 : i32, i32
  }
  func.func @transform_3(%arg0: i32, %arg1: i32) -> (i32, i32) {
    %c0_i32 = arith.constant 0 : i32
    %c0_i32_0 = arith.constant 0 : i32
    %c0_i32_1 = arith.constant 0 : i32
    return %c0_i32, %c0_i32_0 : i32, i32
  }
  func.func @transform_4(%arg0: i32, %arg1: i32) -> (i32, i32) {
    %c0_i32 = arith.constant 0 : i32
    %c0_i32_0 = arith.constant 0 : i32
    %c0_i32_1 = arith.constant 0 : i32
    return %c0_i32, %c0_i32_0 : i32, i32
  }
  func.func @transform_5(%arg0: i32, %arg1: i32) -> (i32, i32, i32) {
    %c0_i32 = arith.constant 0 : i32
    %c0_i32_0 = arith.constant 0 : i32
    return %arg0, %c0_i32, %arg1 : i32, i32, i32
  }
  func.func @transform_6(%arg0: i32, %arg1: i32) -> (i32, i32, i32) {
    %c0_i32 = arith.constant 0 : i32
    %c0_i32_0 = arith.constant 0 : i32
    return %arg0, %c0_i32, %arg1 : i32, i32, i32
  }
}

</mosaic_0001>

<llo_original>
// kernel: tpu_custom_call.1
$region0: #{tpu_custom_call.1}
  #allocation0 [shape = 'u32[]', space=smem, size = 0x4, offset = 0x4, fixed_abs, tag = 'smem constant byte address 0x4 - core index']
  #allocation1 [shape = 'u32[144,128]{1,0:T(1,128)}', space=vmem, size = 0x12000, scoped, tag = 'internal scratch']
  %s0 = inlined_call_operand.vmem [shape: f32[2,32], index: 0, kind: input, shape index: {}]
  %s1 = inlined_call_operand.vmem [shape: f32[32,4], index: 1, kind: input, shape index: {}]
  %s2 = inlined_call_operand.vmem [shape: f32[32,4], index: 2, kind: input, shape index: {}]
  %s3 = inlined_call_operand.vmem [shape: f32[1,4], index: 3, kind: input, shape index: {}]
  %s4 = inlined_call_operand.vmem [shape: f32[1,4], index: 4, kind: input, shape index: {}]
  %s5 = inlined_call_operand.vmem [shape: f32[2,4,256], index: 5, kind: input, shape index: {}]
  %s6 = inlined_call_operand.hbm [shape: f32[2,4,256], index: 6, kind: output, shape index: {}]
  %s7 = sld [smem:[#allocation0]]
  $region57: #{tpu_custom_call.1} parent=0
    _
  %s9 = ssub.s32 1, %s7
  %s10 = scalar_select 0, %s9, %s7
  $region1: #{tpu_custom_call.1} parent=0
    #allocation2 [shape = 'u8[8192]{0}', space=vmem, size = 0x2000, scoped, tag = 'output window, operand 0']
    #allocation3 [shape = 's32[2]{0}', space=sflag, size = 0x8, scoped, tag = 'scoped memory for tpu_custom_call.1']
    %11 = vsyncpa [#allocation3], 0
    %s12 = scalar_lea.sflag [#allocation3], 1
    %13 = vsyncpa %s12, 0
    loop: start=0, step=1, limit=4
    $region2: #{tpu_custom_call.1} parent=1 // loop_pre_header
      _
    $region3: #{tpu_custom_call.1} parent=1 // loop_header
      %s15 = sphi 0, %s19
      %p16 = scmp.ge.s32.totalorder %s15, 4
      %s22 = sphi 0, %s34
      %s23 = sphi 0, %s30
      %s24 = sphi 0, %s22
      %s25 = sphi 0, %s23
      %s26 = sphi 0, %s24
      %s27 = sphi 0, %s25
      %s35 = sphi 0, %s35
      %s37 = sphi 0, %s35
      %s38 = sphi 0, %s37
      %s52 = sphi 0, %s38
      %s56 = sphi 0, %s56
      %s58 = sphi 0, %s56
      %s59 = sphi 0, %s58
      %s73 = sphi 0, %s59
      %s77 = sphi 0, %s77
      %s79 = sphi 0, %s77
      %s80 = sphi 0, %s79
      %s94 = sphi 0, %s80
      %s98 = sphi 0, %s98
      %s100 = sphi 0, %s98
      %s101 = sphi 0, %s100
      %s115 = sphi 0, %s101
      %s119 = sphi 0, %s119
      %s121 = sphi 0, %s119
      %s122 = sphi 0, %s121
      %s136 = sphi 0, %s122
      %s144 = sphi 0, %s146
      %s147 = sphi 0, %s144
      %s148 = sphi 0, %s147
      %s164 = sphi 0, %s148
      %s172 = sphi 0, %s174
      %s175 = sphi 0, %s172
      %s176 = sphi 0, %s175
      %s192 = sphi 0, %s176
    $region4: #{tpu_custom_call.1} parent=1 // loop_header_branch
      %18 = sbr.rel (%p16) target = $region8
    $region5: #{tpu_custom_call.1} parent=1 // loop_body
      %s20 = ssub.s32 %s15, 1
      %s21 = ssub.s32 %s15, 2
      %s28 = sadd.s32 1, %s23
      %p29 = scmp.ge.s32.totalorder %s28, 1
      %s30 = scalar_select %p29, 0, %s28
      %s31 = sadd.s32 1, %s22
      %s32 = scalar_select %p29, %s31, %s22
      %p33 = scmp.ge.s32.totalorder %s32, 2
      %s34 = scalar_select %p33, 0, %s32
      %s36 = sadd.s32 %s35, 1
      %p39 = scmp.eq.s32.totalorder %s15, 1
      %p40 = scmp.ne.s32.totalorder %s35, %s37
      %p41 = scmp.eq.s32.totalorder %s15, 0
      %p42 = por %p40, %p41
      %p43 = scmp.ne.s32.totalorder %s35, %s37
      %p44 = scmp.eq.s32.totalorder %s20, 1
      %p45 = por %p43, %p44
      %p46 = scmp.ne.s32.totalorder %s37, %s38
      %p47 = scmp.eq.s32.totalorder %s20, 0
      %p48 = por %p46, %p47
      %p49 = scmp.ne.s32.totalorder %s37, %s38
      %p50 = scmp.eq.s32.totalorder %s21, 1
      %p51 = por %p49, %p50
      %p53 = scmp.ne.s32.totalorder %s38, %s52
      %p54 = scmp.eq.s32.totalorder %s21, 0
      %p55 = por %p53, %p54
      %s57 = sadd.s32 %s56, 1
      %p60 = scmp.eq.s32.totalorder %s15, 1
      %p61 = scmp.ne.s32.totalorder %s56, %s58
      %p62 = scmp.eq.s32.totalorder %s15, 0
      %p63 = por %p61, %p62
      %p64 = scmp.ne.s32.totalorder %s56, %s58
      %p65 = scmp.eq.s32.totalorder %s20, 1
      %p66 = por %p64, %p65
      %p67 = scmp.ne.s32.totalorder %s58, %s59
      %p68 = scmp.eq.s32.totalorder %s20, 0
      %p69 = por %p67, %p68
      %p70 = scmp.ne.s32.totalorder %s58, %s59
      %p71 = scmp.eq.s32.totalorder %s21, 1
      %p72 = por %p70, %p71
      %p74 = scmp.ne.s32.totalorder %s59, %s73
      %p75 = scmp.eq.s32.totalorder %s21, 0
      %p76 = por %p74, %p75
      %s78 = sadd.s32 %s77, 1
      %p81 = scmp.eq.s32.totalorder %s15, 1
      %p82 = scmp.ne.s32.totalorder %s77, %s79
      %p83 = scmp.eq.s32.totalorder %s15, 0
      %p84 = por %p82, %p83
      %p85 = scmp.ne.s32.totalorder %s77, %s79
      %p86 = scmp.eq.s32.totalorder %s20, 1
      %p87 = por %p85, %p86
      %p88 = scmp.ne.s32.totalorder %s79, %s80
      %p89 = scmp.eq.s32.totalorder %s20, 0
      %p90 = por %p88, %p89
      %p91 = scmp.ne.s32.totalorder %s79, %s80
      %p92 = scmp.eq.s32.totalorder %s21, 1
      %p93 = por %p91, %p92
      %p95 = scmp.ne.s32.totalorder %s80, %s94
      %p96 = scmp.eq.s32.totalorder %s21, 0
      %p97 = por %p95, %p96
      %s99 = sadd.s32 %s98, 1
      %p102 = scmp.eq.s32.totalorder %s15, 1
      %p103 = scmp.ne.s32.totalorder %s98, %s100
      %p104 = scmp.eq.s32.totalorder %s15, 0
      %p105 = por %p103, %p104
      %p106 = scmp.ne.s32.totalorder %s98, %s100
      %p107 = scmp.eq.s32.totalorder %s20, 1
      %p108 = por %p106, %p107
      %p109 = scmp.ne.s32.totalorder %s100, %s101
      %p110 = scmp.eq.s32.totalorder %s20, 0
      %p111 = por %p109, %p110
      %p112 = scmp.ne.s32.totalorder %s100, %s101
      %p113 = scmp.eq.s32.totalorder %s21, 1
      %p114 = por %p112, %p113
      %p116 = scmp.ne.s32.totalorder %s101, %s115
      %p117 = scmp.eq.s32.totalorder %s21, 0
      %p118 = por %p116, %p117
      %s120 = sadd.s32 %s119, 1
      %p123 = scmp.eq.s32.totalorder %s15, 1
      %p124 = scmp.ne.s32.totalorder %s119, %s121
      %p125 = scmp.eq.s32.totalorder %s15, 0
      %p126 = por %p124, %p125
      %p127 = scmp.ne.s32.totalorder %s119, %s121
      %p128 = scmp.eq.s32.totalorder %s20, 1
      %p129 = por %p127, %p128
      %p130 = scmp.ne.s32.totalorder %s121, %s122
      %p131 = scmp.eq.s32.totalorder %s20, 0
      %p132 = por %p130, %p131
      %p133 = scmp.ne.s32.totalorder %s121, %s122
      %p134 = scmp.eq.s32.totalorder %s21, 1
      %p135 = por %p133, %p134
      %p137 = scmp.ne.s32.totalorder %s122, %s136
      %p138 = scmp.eq.s32.totalorder %s21, 0
      %p139 = por %p137, %p138
      %s140 = ssub.s32 %s22, %s34
      %s141 = ssub.s32 %s23, %s30
      %s142 = sor.u32 %s140, %s141
      %p143 = scmp.eq.s32.totalorder %s142, 0
      %s145 = sadd.s32 %s144, 1
      %s146 = scalar_select %p143, %s144, %s145
      %p149 = pneg %p143
      %p150 = scmp.eq.s32.totalorder %s15, 1
      %p151 = por %p149, %p150
      %p152 = scmp.ne.s32.totalorder %s144, %s147
      %p153 = scmp.eq.s32.totalorder %s15, 0
      %p154 = por %p152, %p153
      %p155 = scmp.ne.s32.totalorder %s144, %s147
      %p156 = scmp.eq.s32.totalorder %s20, 1
      %p157 = por %p155, %p156
      %p158 = scmp.ne.s32.totalorder %s147, %s148
      %p159 = scmp.eq.s32.totalorder %s20, 0
      %p160 = por %p158, %p159
      %p161 = scmp.ne.s32.totalorder %s147, %s148
      %p162 = scmp.eq.s32.totalorder %s21, 1
      %p163 = por %p161, %p162
      %p165 = scmp.ne.s32.totalorder %s148, %s164
      %p166 = scmp.eq.s32.totalorder %s21, 0
      %p167 = por %p165, %p166
      %s168 = ssub.s32 %s22, %s34
      %s169 = ssub.s32 %s23, %s30
      %s170 = sor.u32 %s168, %s169
      %p171 = scmp.eq.s32.totalorder %s170, 0
      %s173 = sadd.s32 %s172, 1
      %s174 = scalar_select %p171, %s172, %s173
      %p177 = pneg %p171
      %p178 = scmp.eq.s32.totalorder %s15, 1
      %p179 = por %p177, %p178
      %p180 = scmp.ne.s32.totalorder %s172, %s175
      %p181 = scmp.eq.s32.totalorder %s15, 0
      %p182 = por %p180, %p181
      %p183 = scmp.ne.s32.totalorder %s172, %s175
      %p184 = scmp.eq.s32.totalorder %s20, 1
      %p185 = por %p183, %p184
      %p186 = scmp.ne.s32.totalorder %s175, %s176
      %p187 = scmp.eq.s32.totalorder %s20, 0
      %p188 = por %p186, %p187
      %p189 = scmp.ne.s32.totalorder %s175, %s176
      %p190 = scmp.eq.s32.totalorder %s21, 1
      %p191 = por %p189, %p190
      %p193 = scmp.ne.s32.totalorder %s176, %s192
      %p194 = scmp.eq.s32.totalorder %s21, 0
      %p195 = por %p193, %p194
      %p196 = scmp.le.s32.totalorder 1, %s15
      %p197 = scmp.lt.s32.totalorder %s15, 3
      %p198 = pnand %p196, %p197
      %p199 = pneg %p198
      // Predicated region
      $region9: #{tpu_custom_call.1} parent=5 // pred_check
        _
      $region10: #{tpu_custom_call.1} parent=5 // pred_check_branch
        %201 = sbr.rel (%p198) target = $region12
      $region11: #{tpu_custom_call.1} parent=5 // pred_region
        %s202 = ssub.s32 %s15, 1
        // Predicated region
        $region13: #{tpu_custom_call.1} parent=11 // pred_check
          %p203 = pneg %p48
        $region14: #{tpu_custom_call.1} parent=11 // pred_check_branch
          %205 = sbr.rel (%p203) target = $region16
        $region15: #{tpu_custom_call.1} parent=11 // pred_region
          _
        $region16: #{tpu_custom_call.1} parent=11 // pred_fallthru
          _
        // Predicated region
        $region17: #{tpu_custom_call.1} parent=11 // pred_check
          %p206 = pneg %p69
        $region18: #{tpu_custom_call.1} parent=11 // pred_check_branch
          %208 = sbr.rel (%p206) target = $region20
        $region19: #{tpu_custom_call.1} parent=11 // pred_region
          _
        $region20: #{tpu_custom_call.1} parent=11 // pred_fallthru
          _
        // Predicated region
        $region21: #{tpu_custom_call.1} parent=11 // pred_check
          %p209 = pneg %p90
        $region22: #{tpu_custom_call.1} parent=11 // pred_check_branch
          %211 = sbr.rel (%p209) target = $region24
        $region23: #{tpu_custom_call.1} parent=11 // pred_region
          _
        $region24: #{tpu_custom_call.1} parent=11 // pred_fallthru
          _
        // Predicated region
        $region25: #{tpu_custom_call.1} parent=11 // pred_check
          %p212 = pneg %p111
        $region26: #{tpu_custom_call.1} parent=11 // pred_check_branch
          %214 = sbr.rel (%p212) target = $region28
        $region27: #{tpu_custom_call.1} parent=11 // pred_region
          _
        $region28: #{tpu_custom_call.1} parent=11 // pred_fallthru
          _
        // Predicated region
        $region29: #{tpu_custom_call.1} parent=11 // pred_check
          %p215 = pneg %p132
        $region30: #{tpu_custom_call.1} parent=11 // pred_check_branch
          %217 = sbr.rel (%p215) target = $region32
        $region31: #{tpu_custom_call.1} parent=11 // pred_region
          _
        $region32: #{tpu_custom_call.1} parent=11 // pred_fallthru
          _
      $region12: #{tpu_custom_call.1} parent=5 // pred_fallthru
        _
      %p218 = scmp.lt.s32.totalorder %s15, 2
      // Predicated region
      $region33: #{tpu_custom_call.1} parent=5 // pred_check
        %p219 = pneg %p218
      $region34: #{tpu_custom_call.1} parent=5 // pred_check_branch
        %221 = sbr.rel (%p219) target = $region36
      $region35: #{tpu_custom_call.1} parent=5 // pred_region
        // Predicated region
        $region37: #{tpu_custom_call.1} parent=35 // pred_check
          %p222 = pneg %p154
        $region38: #{tpu_custom_call.1} parent=35 // pred_check_branch
          %224 = sbr.rel (%p222) target = $region40
        $region39: #{tpu_custom_call.1} parent=35 // pred_region
          %s225 = smul.u32 2, %s23
          %p226 = scmp.lt.s32.totalorder %s22, 1
          %s227 = scalar_select %p226, %s22, 1
          %p228 = scmp.lt.s32.totalorder %s225, 1
          %s229 = scalar_select %p228, %s225, 1
          %s230 = smul.addr %s227, 2
          %s231 = sadd.s32 %s229, %s230
          %s232 = smul.addr %s231, 4
          %s233 = scalar_lea.vmem %s5, %s232
          %s234 = smul.u32 2, %s23
        $region40: #{tpu_custom_call.1} parent=35 // pred_fallthru
          _
      $region36: #{tpu_custom_call.1} parent=5 // pred_fallthru
        _
      %p235 = scmp.le.s32.totalorder 1, %s15
      %p236 = scmp.lt.s32.totalorder %s15, 3
      %p237 = pnand %p235, %p236
      %p238 = pneg %p237
      // Predicated region
      $region41: #{tpu_custom_call.1} parent=5 // pred_check
        _
      $region42: #{tpu_custom_call.1} parent=5 // pred_check_branch
        %240 = sbr.rel (%p237) target = $region44
      $region43: #{tpu_custom_call.1} parent=5 // pred_region
        %s241 = ssub.s32 %s15, 1
        %p242 = pneg %p48
        %p243 = pneg %p45
        %p244 = pneg %p69
        %p245 = pneg %p66
        %p246 = pneg %p90
        %p247 = pneg %p87
        %p248 = pneg %p111
        %p249 = pneg %p108
        %p250 = pneg %p132
        %p251 = pneg %p129
        %s252 = smul.u32 2, %s25
        %p253 = scmp.lt.s32.totalorder %s24, 1
        %s254 = scalar_select %p253, %s24, 1
        %p255 = scmp.lt.s32.totalorder %s252, 1
        %s256 = scalar_select %p255, %s252, 1
        %s257 = smul.addr %s254, 2
        %s258 = sadd.s32 %s256, %s257
        %s259 = smul.addr %s258, 4
        %s260 = scalar_lea.vmem %s5, %s259
        %p261 = pneg %p160
        %p262 = pneg %p157
        %p263 = pneg %p188
        %p264 = pneg %p185
        %s265 = sand.u32 %s175, 1
        %s266 = scalar_lea.sflag [#allocation3], %s265
        %s267 = sand.u32 %s175, 1
        %s268 = smul.addr %s267, 8
        %s269 = scalar_lea.vmem [#allocation2], %s268
        %s270 = smul.u32 2, %s25
        %p271 = scmp.lt.s32.totalorder %s24, 1
        %s272 = scalar_select %p271, %s24, 1
        %p273 = scmp.lt.s32.totalorder %s270, 1
        %s274 = scalar_select %p273, %s270, 1
        %s275 = smul.addr %s272, 2
        %s276 = sadd.s32 %s274, %s275
        %s277 = smul.addr %s276, 4
        %s278 = scalar_lea.vmem %s5, %s277
        %s279 = smul.u32 2, %s25
        %s280 = smul.u32 2, %s25
        %s281 = scalar_lea.vmem %s0, %s24
        %v282 = vld [vmem:[%s281] sm:$0x1]
        %v283 = vld [vmem:[%s1] sm:$0xff]
        %v284 = vld [vmem:[%s1 + $0x8] sm:$0xff]
        %v285 = vld [vmem:[%s1 + $0x10] sm:$0xff]
        %v286 = vld [vmem:[%s1 + $0x18] sm:$0xff]
        %vm287 = vcmask 261120
        %v289 = vsel %vm287, %v282, 0
        %291 = vmatprep.subr.mxu0 0.0
        %292 = vmatpush1.msra.mxu0 0.0
        %293 = vmatprep.subr.mxu0 0.0
        %294 = vmatpush1.msra.mxu0 0.0
        %295 = vmatprep.subr.mxu0 0.0
        %296 = vmatpush1.msra.mxu0 0.0
        %297 = vmatprep.subr.mxu0 0.0
        %298 = vmatpush1.msra.mxu0 0.0
        %299 = vmatprep.subr.mxu0 0.0
        %300 = vmatpush1.msra.mxu0 0.0
        %301 = vmatprep.subr.mxu0 0.0
        %302 = vmatpush1.msra.mxu0 0.0
        %303 = vmatprep.subr.mxu0 0.0
        %304 = vmatpush1.msra.mxu0 0.0
        %305 = vmatprep.subr.mxu0 0.0
        %306 = vmatpush1.msra.mxu0 0.0
        %307 = vmatprep.subr.mxu0 0.0
        %308 = vmatpush1.msra.mxu0 0.0
        %309 = vmatprep.subr.mxu0 0.0
        %310 = vmatpush1.msra.mxu0 0.0
        %311 = vmatprep.subr.mxu0 0.0
        %312 = vmatpush1.msra.mxu0 0.0
        %313 = vmatprep.subr.mxu0 0.0
        %314 = vmatpush1.msra.mxu0 0.0
        %315 = vmatprep.subr.mxu0 0.0
        %316 = vmatpush1.msra.mxu0 %v286
        %317 = vmatprep.subr.mxu0 0.0
        %318 = vmatpush1.msra.mxu0 %v285
        %319 = vmatprep.subr.mxu0 0.0
        %320 = vmatpush1.msra.mxu0 %v284
        %321 = vmatprep.subr.mxu0 0.0
        %322 = vmatpush1.msra.mxu0 %v283
        %323 = vmatprep.subr.mxu0 0.0
        %324 = vmatpush2.msra.mxu0 0.0
        %325 = vmatprep.subr.mxu0 0.0
        %326 = vmatpush2.msra.mxu0 0.0
        %327 = vmatprep.subr.mxu0 0.0
        %328 = vmatpush2.msra.mxu0 0.0
        %329 = vmatprep.subr.mxu0 0.0
        %330 = vmatpush2.msra.mxu0 0.0
        %331 = vmatprep.subr.mxu0 0.0
        %332 = vmatpush2.msra.mxu0 0.0
        %333 = vmatprep.subr.mxu0 0.0
        %334 = vmatpush2.msra.mxu0 0.0
        %335 = vmatprep.subr.mxu0 0.0
        %336 = vmatpush2.msra.mxu0 0.0
        %337 = vmatprep.subr.mxu0 0.0
        %338 = vmatpush2.msra.mxu0 0.0
        %339 = vmatprep.subr.mxu0 0.0
        %340 = vmatpush2.msra.mxu0 0.0
        %341 = vmatprep.subr.mxu0 0.0
        %342 = vmatpush2.msra.mxu0 0.0
        %343 = vmatprep.subr.mxu0 0.0
        %344 = vmatpush2.msra.mxu0 0.0
        %345 = vmatprep.subr.mxu0 0.0
        %346 = vmatpush2.msra.mxu0 0.0
        %347 = vmatprep.subr.mxu0 0.0
        %348 = vmatpush2.msra.mxu0 0.0
        %349 = vmatprep.subr.mxu0 0.0
        %350 = vmatpush2.msra.mxu0 0.0
        %351 = vmatprep.subr.mxu0 0.0
        %352 = vmatpush2.msra.mxu0 0.0
        %353 = vmatprep.subr.mxu0 0.0
        %354 = vmatpush2.msra.mxu0 0.0
        %355 = vmatprep.mubr.f32.mxu0 0.0
        %356 = vmatmul.mubr.f32.gmra.mxu0 %v289
        %v357 = vpop.f32.mrf.mxu0
        %v358 = vadd.f32 0.0, %v357
        %v359 = vpop.f32.mrf.mxu0
        %360 = vdwg.mxu0
        %v361 = vmul.f32 %v358, 0.17677669
        %v362 = vld [vmem:[%s3] sm:$0x1]
        %v363 = vadd.f32 %v361, %v362
        %v364 = vadd.f32 %v363, 1.0
        %v365 = vld [vmem:[%s2] sm:$0xff]
        %v366 = vld [vmem:[%s2 + $0x8] sm:$0xff]
        %v367 = vld [vmem:[%s2 + $0x10] sm:$0xff]
        %v368 = vld [vmem:[%s2 + $0x18] sm:$0xff]
        %369 = vmatprep.subr.mxu0 0.0
        %370 = vmatpush1.msra.mxu0 0.0
        %371 = vmatprep.subr.mxu0 0.0
        %372 = vmatpush1.msra.mxu0 0.0
        %373 = vmatprep.subr.mxu0 0.0
        %374 = vmatpush1.msra.mxu0 0.0
        %375 = vmatprep.subr.mxu0 0.0
        %376 = vmatpush1.msra.mxu0 0.0
        %377 = vmatprep.subr.mxu0 0.0
        %378 = vmatpush1.msra.mxu0 0.0
        %379 = vmatprep.subr.mxu0 0.0
        %380 = vmatpush1.msra.mxu0 0.0
        %381 = vmatprep.subr.mxu0 0.0
        %382 = vmatpush1.msra.mxu0 0.0
        %383 = vmatprep.subr.mxu0 0.0
        %384 = vmatpush1.msra.mxu0 0.0
        %385 = vmatprep.subr.mxu0 0.0
        %386 = vmatpush1.msra.mxu0 0.0
        %387 = vmatprep.subr.mxu0 0.0
        %388 = vmatpush1.msra.mxu0 0.0
        %389 = vmatprep.subr.mxu0 0.0
        %390 = vmatpush1.msra.mxu0 0.0
        %391 = vmatprep.subr.mxu0 0.0
        %392 = vmatpush1.msra.mxu0 0.0
        %393 = vmatprep.subr.mxu0 0.0
        %394 = vmatpush1.msra.mxu0 %v368
        %395 = vmatprep.subr.mxu0 0.0
        %396 = vmatpush1.msra.mxu0 %v367
        %397 = vmatprep.subr.mxu0 0.0
        %398 = vmatpush1.msra.mxu0 %v366
        %399 = vmatprep.subr.mxu0 0.0
        %400 = vmatpush1.msra.mxu0 %v365
        %401 = vmatprep.subr.mxu0 0.0
        %402 = vmatpush2.msra.mxu0 0.0
        %403 = vmatprep.subr.mxu0 0.0
        %404 = vmatpush2.msra.mxu0 0.0
        %405 = vmatprep.subr.mxu0 0.0
        %406 = vmatpush2.msra.mxu0 0.0
        %407 = vmatprep.subr.mxu0 0.0
        %408 = vmatpush2.msra.mxu0 0.0
        %409 = vmatprep.subr.mxu0 0.0
        %410 = vmatpush2.msra.mxu0 0.0
        %411 = vmatprep.subr.mxu0 0.0
        %412 = vmatpush2.msra.mxu0 0.0
        %413 = vmatprep.subr.mxu0 0.0
        %414 = vmatpush2.msra.mxu0 0.0
        %415 = vmatprep.subr.mxu0 0.0
        %416 = vmatpush2.msra.mxu0 0.0
        %417 = vmatprep.subr.mxu0 0.0
        %418 = vmatpush2.msra.mxu0 0.0
        %419 = vmatprep.subr.mxu0 0.0
        %420 = vmatpush2.msra.mxu0 0.0
        %421 = vmatprep.subr.mxu0 0.0
        %422 = vmatpush2.msra.mxu0 0.0
        %423 = vmatprep.subr.mxu0 0.0
        %424 = vmatpush2.msra.mxu0 0.0
        %425 = vmatprep.subr.mxu0 0.0
        %426 = vmatpush2.msra.mxu0 0.0
        %427 = vmatprep.subr.mxu0 0.0
        %428 = vmatpush2.msra.mxu0 0.0
        %429 = vmatprep.subr.mxu0 0.0
        %430 = vmatpush2.msra.mxu0 0.0
        %431 = vmatprep.subr.mxu0 0.0
        %432 = vmatpush2.msra.mxu0 0.0
        %433 = vmatprep.mubr.f32.mxu0 0.0
        %434 = vmatmul.mubr.f32.gmra.mxu0 %v289
        %v435 = vpop.f32.mrf.mxu0
        %v436 = vadd.f32 0.0, %v435
        %v437 = vpop.f32.mrf.mxu0
        %438 = vdwg.mxu0
        %v439 = vmul.f32 %v436, 0.17677669
        %v440 = vld [vmem:[%s4] sm:$0x1]
        %v441 = vadd.f32 %v439, %v440
        %v442 = vld [vmem:[%s278] sm:$0xff]
        %v443 = vlaneseq
        %v444 = vshrl.u32 %v443, 7
        %v445 = vsub.s32 0, %v444
        %v446 = vrot.slane %v364, %v445
        %448 = vbcast.lane.b32.xlu0 %v446, 256
        %v449 = vpop.permute.xlu0 %448
        %v452 = vunpack.c.l.s4 839922192
        %v453 = vunpack.c.0.s8 %v452
        %v454 = vlaneseq
        %v455 = vshrl.u32 %v454, 7
        %v456 = vsub.s32 %v453, %v455
        %v457 = vrot.slane %v449, %v456
        %v459 = vmul.f32 %v442, %v457
        %v460 = vlaneseq
        %v461 = vshrl.u32 %v460, 7
        %v462 = vsub.s32 0, %v461
        %v463 = vrot.slane %v441, %v462
        %465 = vbcast.lane.b32.xlu0 %v463, 256
        %v466 = vpop.permute.xlu0 %465
        %v469 = vunpack.c.l.s4 839922192
        %v470 = vunpack.c.0.s8 %v469
        %v471 = vlaneseq
        %v472 = vshrl.u32 %v471, 7
        %v473 = vsub.s32 %v470, %v472
        %v474 = vrot.slane %v466, %v473
        %v476 = vadd.f32 %v459, %v474
        %477 = vst [vmem:[%s269] sm:$0xff] %v476
        %s478 = sand.u32 %s175, 1
        %s479 = scalar_lea.sflag [#allocation3], %s478
        %s480 = sand.u32 %s175, 1
        %s481 = smul.addr %s480, 8
        %s482 = scalar_lea.vmem [#allocation2], %s481
        // Predicated region
        $region45: #{tpu_custom_call.1} parent=43 // pred_check
          %p483 = pneg %p185
        $region46: #{tpu_custom_call.1} parent=43 // pred_check_branch
          %485 = sbr.rel (%p483) target = $region48
        $region47: #{tpu_custom_call.1} parent=43 // pred_region
          %s486 = smul.u32 2, %s25
          %s488 = ssub.s32 128, 128
          %489 = vsyncadd %s479, %s488
          %s490 = smul.addr %s24, 2
          %s491 = sadd.s32 %s486, %s490
          %s492 = smul.addr %s491, 64
          %s493 = scalar_lea.hbm %s6, %s492
          %s495 = sshll.u32 %s482, 4
          %s496 = int_to_ptr.vmem [resolvable:$true] %s495
          %498 = dma.vmem_to_hbm [thread:$0]  %s496, 128, %s493, %s479
        $region48: #{tpu_custom_call.1} parent=43 // pred_fallthru
          _
      $region44: #{tpu_custom_call.1} parent=5 // pred_fallthru
        _
      %p499 = scmp.le.s32.totalorder 2, %s15
      // Predicated region
      $region49: #{tpu_custom_call.1} parent=5 // pred_check
        %p500 = pneg %p499
      $region50: #{tpu_custom_call.1} parent=5 // pred_check_branch
        %502 = sbr.rel (%p500) target = $region52
      $region51: #{tpu_custom_call.1} parent=5 // pred_region
        %s503 = ssub.s32 %s15, 2
        // Predicated region
        $region53: #{tpu_custom_call.1} parent=51 // pred_check
          %p504 = pneg %p191
        $region54: #{tpu_custom_call.1} parent=51 // pred_check_branch
          %506 = sbr.rel (%p504) target = $region56
        $region55: #{tpu_custom_call.1} parent=51 // pred_region
          %s507 = sand.u32 %s176, 1
          %s508 = scalar_lea.sflag [#allocation3], %s507
          %s509 = sand.u32 %s176, 1
          %s510 = smul.addr %s509, 8
          %s511 = scalar_lea.vmem [#allocation2], %s510
          %512 = dma.done %s508, 128
        $region56: #{tpu_custom_call.1} parent=51 // pred_fallthru
          _
      $region52: #{tpu_custom_call.1} parent=5 // pred_fallthru
        _
    $region6: #{tpu_custom_call.1} parent=1 // loop_footer
      %s19 = sadd.s32 1, %s15
    $region7: #{tpu_custom_call.1} parent=1 // loop_footer_branch
      %14 = sbr.rel target = $region3
    $region8: #{tpu_custom_call.1} parent=1 // loop_exit
      _
    %513 = vsyncpa [#allocation3], 1
    %s514 = scalar_lea.sflag [#allocation3], 1
    %515 = vsyncpa %s514, 1

</llo_original>
